<compile_context>
chip_gen: v6e
topology: v6e:2x2x1
jax: 0.10.0
libtpu: 0.0.40
codegen_flags: <defaults>
</compile_context>

<pallas_src>
import functools
import math

import jax
import jax.numpy as jnp
import numpy as np
from jax.experimental import pallas as pl
from jax.experimental.pallas import tpu as pltpu


def _round_up(x: int, n: int) -> int:
    return ((x + n - 1) // n) * n


# Kernel feature-row r  ->  PyTorch weight column _PERM[r]
#   r in [0, 24):  sin(2^k * p_d), k = r // 3, d = r % 3  -> col 3 + d*8 + k
#   r in [24, 48): cos(2^k * p_d)                          -> col 27 + d*8 + k
#   r in [48, 51): raw point p_d                           -> col d
_PERM = np.empty(51, dtype=np.int32)
for _r in range(24):
    _k, _d = divmod(_r, 3)
    _PERM[_r] = 3 + _d * 8 + _k
    _PERM[24 + _r] = 27 + _d * 8 + _k
_PERM[48:51] = (0, 1, 2)


def _fourier_encoder_kernel(pts_ref, w_ref, o_ref, feat_ref, *, mxu_dtype=None):
    # pts_ref:  (3, T)  f32   points, channel on sublane, rows on lanes
    # w_ref:    (56, H) f32   permuted/transposed weight; row 51 = bias,
    #                         rows 52..55 = 0 (K padding)
    # o_ref:    (T, H)  f32   output, already row-major (no wrapper transpose)
    # feat_ref: (56, T) f32   VMEM scratch for the feature matrix
    pts = pts_ref[...]                                   # (3, T)
    t = pts.shape[1]

    # Tail rows: raw points, a ones row (bias), zero rows (K padding).
    feat_ref[48:51, :] = pts
    feat_ref[51:52, :] = jnp.ones((1, t), jnp.float32)
    feat_ref[52:56, :] = jnp.zeros((4, t), jnp.float32)

    # Base octave: the only transcendentals in the kernel (6 per point).
    s = jnp.sin(pts)                                     # (3, T)
    c = jnp.cos(pts)
    feat_ref[0:3, :] = s
    feat_ref[24:27, :] = c

    # Octaves 2^1 .. 2^7 via the double-angle recurrence (VPU only).
    for k in range(1, 8):
        s, c = 2.0 * s * c, c * c - s * s
        feat_ref[3 * k:3 * k + 3, :] = s
        feat_ref[24 + 3 * k:24 + 3 * k + 3, :] = c

    feat = feat_ref[...]                                 # (56, T)
    w = w_ref[...]                                       # (56, H)
    if mxu_dtype is not None:
        feat = feat.astype(mxu_dtype)
        w = w.astype(mxu_dtype)
    # (56, T)^T @ (56, H) -> (T, H); bias folded in via the ones row.
    out = jax.lax.dot_general(
        feat, w, dimension_numbers=(((0,), (0,)), ((), ())),
        preferred_element_type=jnp.float32)
    o_ref[...] = out.astype(o_ref.dtype)


def _pick_tile(hidden: int, tm: int) -> int:
    # Keep double-buffered I/O blocks + feature scratch + weight comfortably
    # under the smallest scoped-VMEM default (v5e: 16 MiB; v7x: 32/64 MiB).
    budget = 10 * 1024 * 1024
    tile = tm
    while tile > 128:
        need = 4 * (2 * 3 * tile + 2 * hidden * tile + 56 * tile + 2 * 56 * hidden)
        if need <= budget:
            break
        tile //= 2
    # TODO(synk): for very large hidden (>~8k) add a second ("parallel") grid
    # axis over hidden instead of only shrinking the row tile.
    return tile


@functools.partial(jax.jit, static_argnames=("tm", "mxu_dtype"))
def fourier_point_encoder(points, weight, bias, *, tm=None, mxu_dtype=None):
    """points: (..., 3) f32; weight: (H, 51) (nn.Linear layout); bias: (H,).

    Returns (..., H) float32.  `tm` = max rows per grid step (multiple of 128);
    `mxu_dtype=jnp.bfloat16` optionally casts matmul operands for large H.
    """
    assert points.shape[-1] == 3, "FourierPointEncoder expects 3-D points"
    lead = points.shape[:-1]
    hidden = weight.shape[0]
    m = math.prod(lead) if lead else 1
    if m == 0:                                            # empty-batch guard
        return jnp.zeros((*lead, hidden), jnp.float32)

    if tm is None:
        tm = 1024
    tm = max(128, (tm // 128) * 128)
    tile = min(_pick_tile(hidden, tm), _round_up(m, 128))
    m_pad = _round_up(m, tile)

    # Channel-on-sublane layout; the small pad to the tile boundary fuses
    # with this transpose inside XLA.
    pts_t = points.reshape(m, 3).astype(jnp.float32).T    # (3, m)
    if m_pad != m:
        pts_t = jnp.pad(pts_t, ((0, 0), (0, m_pad - m)))

    # Permute + transpose the weight to the kernel feature order; fold the
    # bias in as row 51 and zero-pad K to 56 (= 7*8).  Tiny one-time op.
    w = weight.astype(jnp.float32)
    w_k = jnp.concatenate(
        [w[:, _PERM].T,                                   # rows 0..50
         bias.reshape(1, hidden).astype(jnp.float32),     # row 51: bias
         jnp.zeros((4, hidden), jnp.float32)],            # rows 52..55: 0
        axis=0)                                           # (56, H)

    grid = (m_pad // tile,)
    kernel = functools.partial(_fourier_encoder_kernel, mxu_dtype=mxu_dtype)
    out = pl.pallas_call(
        kernel,
        out_shape=jax.ShapeDtypeStruct((m_pad, hidden), jnp.float32),
        grid=grid,
        in_specs=[
            pl.BlockSpec((3, tile), lambda i: (0, i)),       # points block
            pl.BlockSpec((56, hidden), lambda i: (0, 0)),    # weight (resident)
        ],
        out_specs=pl.BlockSpec((tile, hidden), lambda i: (i, 0)),
        scratch_shapes=[pltpu.VMEM((56, tile), jnp.float32)],
        compiler_params=pltpu.CompilerParams(
            dimension_semantics=("parallel",)),
        cost_estimate=pl.CostEstimate(
            flops=2 * m_pad * 56 * hidden,
            transcendentals=6 * m_pad,
            bytes_accessed=4 * (3 * m_pad + 56 * hidden + m_pad * hidden),
        ),
    )(pts_t, w_k)

    return out[:m].reshape(*lead, hidden)


def _reference(points, weight, bias):
    freqs = 2.0 ** jnp.arange(8, dtype=jnp.float32)
    x = (points[..., None] * freqs).reshape(*points.shape[:-1], -1)
    feat = jnp.concatenate([points, jnp.sin(x), jnp.cos(x)], axis=-1)
    return jnp.dot(feat, weight.T, precision=jax.lax.Precision.HIGHEST) + bias


if __name__ == "__main__":
    hidden_size = 32
    B, N = 2, 16

    key = jax.random.PRNGKey(0)
    k_pts, k_w, k_b = jax.random.split(key, 3)

    points = jax.random.normal(k_pts, (B, N, 3), dtype=jnp.float32)
    # nn.Linear(51, hidden): weight (hidden, 51), bias (hidden,)
    bound = 1.0 / np.sqrt(51.0)
    weight = jax.random.uniform(k_w, (hidden_size, 51), jnp.float32, -bound, bound)
    bias = jax.random.uniform(k_b, (hidden_size,), jnp.float32, -bound, bound)

    out = jax.block_until_ready(fourier_point_encoder(points, weight, bias))
    ref = _reference(points, weight, bias)

    # 2e-3 tolerance: the double-angle octave recurrence drifts ~1e-4 abs at
    # |x| up to 128*|p| (error doubles per octave, kept in f32); the MXU f32
    # matmul and Mosaic-vs-XLA sin/cos range reduction account for the rest.
    np.testing.assert_allclose(np.asarray(out), np.asarray(ref),
                               rtol=2e-3, atol=2e-3)
    assert out.shape == (B, N, hidden_size)
    print("KERNEL_OK")
</pallas_src>

<mosaic_0001>
module attributes {stable_mosaic.version = 11 : i64} {
  func.func @_fourier_encoder_kernel(%arg0: i32, %arg1: memref<3x128xf32, #tpu.memory_space<vmem>>, %arg2: memref<56x32xf32, #tpu.memory_space<vmem>>, %arg3: memref<128x32xf32, #tpu.memory_space<vmem>>, %arg4: memref<56x128xf32, #tpu.memory_space<vmem>>) attributes {dimension_semantics = [#tpu.dimension_semantics<parallel>], iteration_bounds = array<i64: 1>, scalar_prefetch = 0 : i64, scratch_operands = 1 : i64, tpu.core_type = #tpu.core_type<tc>, window_params = [{transform_indices = @transform_0, window_bounds = array<i64: 3, 128>}, {pipeline_mode = #tpu.pipeline_mode<synchronous>, transform_indices = @transform_1, window_bounds = array<i64: 56, 32>}, {transform_indices = @transform_2, window_bounds = array<i64: 128, 32>}]} {
    %c0 = arith.constant 0 : index
    %c0_0 = arith.constant 0 : index
    %0 = vector.load %arg1[%c0, %c0_0] : memref<3x128xf32, #tpu.memory_space<vmem>>, vector<3x128xf32>
    %c48 = arith.constant 48 : index
    %c0_1 = arith.constant 0 : index
    %1 = vector.load %arg4[%c48, %c0_1] : memref<56x128xf32, #tpu.memory_space<vmem>>, vector<3x128xf32>
    tpu.vector_store %arg4[%c48, %c0_1], %0 {strides = array<i32>} : memref<56x128xf32, #tpu.memory_space<vmem>>, vector<3x128xf32>,
    %cst = arith.constant 1.000000e+00 : f32
    %2 = vector.broadcast %cst : f32 to vector<1x128xf32>
    %c51 = arith.constant 51 : index
    %c0_2 = arith.constant 0 : index
    %3 = vector.load %arg4[%c51, %c0_2] : memref<56x128xf32, #tpu.memory_space<vmem>>, vector<1x128xf32>
    tpu.vector_store %arg4[%c51, %c0_2], %2 {strides = array<i32>} : memref<56x128xf32, #tpu.memory_space<vmem>>, vector<1x128xf32>,
    %cst_3 = arith.constant 0.000000e+00 : f32
    %4 = vector.broadcast %cst_3 : f32 to vector<4x128xf32>
    %c52 = arith.constant 52 : index
    %c0_4 = arith.constant 0 : index
    %5 = vector.load %arg4[%c52, %c0_4] : memref<56x128xf32, #tpu.memory_space<vmem>>, vector<4x128xf32>
    tpu.vector_store %arg4[%c52, %c0_4], %4 {strides = array<i32>} : memref<56x128xf32, #tpu.memory_space<vmem>>, vector<4x128xf32>,
    %6 = math.sin %0 : vector<3x128xf32>
    %7 = math.cos %0 : vector<3x128xf32>
    %c0_5 = arith.constant 0 : index
    %c0_6 = arith.constant 0 : index
    %8 = vector.load %arg4[%c0_5, %c0_6] : memref<56x128xf32, #tpu.memory_space<vmem>>, vector<3x128xf32>
    tpu.vector_store %arg4[%c0_5, %c0_6], %6 {strides = array<i32>} : memref<56x128xf32, #tpu.memory_space<vmem>>, vector<3x128xf32>,
    %c24 = arith.constant 24 : index
    %c0_7 = arith.constant 0 : index
    %9 = vector.load %arg4[%c24, %c0_7] : memref<56x128xf32, #tpu.memory_space<vmem>>, vector<3x128xf32>
    tpu.vector_store %arg4[%c24, %c0_7], %7 {strides = array<i32>} : memref<56x128xf32, #tpu.memory_space<vmem>>, vector<3x128xf32>,
    %cst_8 = arith.constant 2.000000e+00 : f32
    %10 = vector.broadcast %cst_8 : f32 to vector<3x128xf32>
    %11 = arith.mulf %10, %6 : vector<3x128xf32>
    %12 = arith.mulf %11, %7 : vector<3x128xf32>
    %13 = arith.mulf %7, %7 : vector<3x128xf32>
    %14 = arith.mulf %6, %6 : vector<3x128xf32>
    %15 = arith.subf %13, %14 : vector<3x128xf32>
    %c3 = arith.constant 3 : index
    %c0_9 = arith.constant 0 : index
    %16 = vector.load %arg4[%c3, %c0_9] : memref<56x128xf32, #tpu.memory_space<vmem>>, vector<3x128xf32>
    tpu.vector_store %arg4[%c3, %c0_9], %12 {strides = array<i32>} : memref<56x128xf32, #tpu.memory_space<vmem>>, vector<3x128xf32>,
    %c27 = arith.constant 27 : index
    %c0_10 = arith.constant 0 : index
    %17 = vector.load %arg4[%c27, %c0_10] : memref<56x128xf32, #tpu.memory_space<vmem>>, vector<3x128xf32>
    tpu.vector_store %arg4[%c27, %c0_10], %15 {strides = array<i32>} : memref<56x128xf32, #tpu.memory_space<vmem>>, vector<3x128xf32>,
    %cst_11 = arith.constant 2.000000e+00 : f32
    %18 = vector.broadcast %cst_11 : f32 to vector<3x128xf32>
    %19 = arith.mulf %18, %12 : vector<3x128xf32>
    %20 = arith.mulf %19, %15 : vector<3x128xf32>
    %21 = arith.mulf %15, %15 : vector<3x128xf32>
    %22 = arith.mulf %12, %12 : vector<3x128xf32>
    %23 = arith.subf %21, %22 : vector<3x128xf32>
    %c6 = arith.constant 6 : index
    %c0_12 = arith.constant 0 : index
    %24 = vector.load %arg4[%c6, %c0_12] : memref<56x128xf32, #tpu.memory_space<vmem>>, vector<3x128xf32>
    tpu.vector_store %arg4[%c6, %c0_12], %20 {strides = array<i32>} : memref<56x128xf32, #tpu.memory_space<vmem>>, vector<3x128xf32>,
    %c30 = arith.constant 30 : index
    %c0_13 = arith.constant 0 : index
    %25 = vector.load %arg4[%c30, %c0_13] : memref<56x128xf32, #tpu.memory_space<vmem>>, vector<3x128xf32>
    tpu.vector_store %arg4[%c30, %c0_13], %23 {strides = array<i32>} : memref<56x128xf32, #tpu.memory_space<vmem>>, vector<3x128xf32>,
    %cst_14 = arith.constant 2.000000e+00 : f32
    %26 = vector.broadcast %cst_14 : f32 to vector<3x128xf32>
    %27 = arith.mulf %26, %20 : vector<3x128xf32>
    %28 = arith.mulf %27, %23 : vector<3x128xf32>
    %29 = arith.mulf %23, %23 : vector<3x128xf32>
    %30 = arith.mulf %20, %20 : vector<3x128xf32>
    %31 = arith.subf %29, %30 : vector<3x128xf32>
    %c9 = arith.constant 9 : index
    %c0_15 = arith.constant 0 : index
    %32 = vector.load %arg4[%c9, %c0_15] : memref<56x128xf32, #tpu.memory_space<vmem>>, vector<3x128xf32>
    tpu.vector_store %arg4[%c9, %c0_15], %28 {strides = array<i32>} : memref<56x128xf32, #tpu.memory_space<vmem>>, vector<3x128xf32>,
    %c33 = arith.constant 33 : index
    %c0_16 = arith.constant 0 : index
    %33 = vector.load %arg4[%c33, %c0_16] : memref<56x128xf32, #tpu.memory_space<vmem>>, vector<3x128xf32>
    tpu.vector_store %arg4[%c33, %c0_16], %31 {strides = array<i32>} : memref<56x128xf32, #tpu.memory_space<vmem>>, vector<3x128xf32>,
    %cst_17 = arith.constant 2.000000e+00 : f32
    %34 = vector.broadcast %cst_17 : f32 to vector<3x128xf32>
    %35 = arith.mulf %34, %28 : vector<3x128xf32>
    %36 = arith.mulf %35, %31 : vector<3x128xf32>
    %37 = arith.mulf %31, %31 : vector<3x128xf32>
    %38 = arith.mulf %28, %28 : vector<3x128xf32>
    %39 = arith.subf %37, %38 : vector<3x128xf32>
    %c12 = arith.constant 12 : index
    %c0_18 = arith.constant 0 : index
    %40 = vector.load %arg4[%c12, %c0_18] : memref<56x128xf32, #tpu.memory_space<vmem>>, vector<3x128xf32>
    tpu.vector_store %arg4[%c12, %c0_18], %36 {strides = array<i32>} : memref<56x128xf32, #tpu.memory_space<vmem>>, vector<3x128xf32>,
    %c36 = arith.constant 36 : index
    %c0_19 = arith.constant 0 : index
    %41 = vector.load %arg4[%c36, %c0_19] : memref<56x128xf32, #tpu.memory_space<vmem>>, vector<3x128xf32>
    tpu.vector_store %arg4[%c36, %c0_19], %39 {strides = array<i32>} : memref<56x128xf32, #tpu.memory_space<vmem>>, vector<3x128xf32>,
    %cst_20 = arith.constant 2.000000e+00 : f32
    %42 = vector.broadcast %cst_20 : f32 to vector<3x128xf32>
    %43 = arith.mulf %42, %36 : vector<3x128xf32>
    %44 = arith.mulf %43, %39 : vector<3x128xf32>
    %45 = arith.mulf %39, %39 : vector<3x128xf32>
    %46 = arith.mulf %36, %36 : vector<3x128xf32>
    %47 = arith.subf %45, %46 : vector<3x128xf32>
    %c15 = arith.constant 15 : index
    %c0_21 = arith.constant 0 : index
    %48 = vector.load %arg4[%c15, %c0_21] : memref<56x128xf32, #tpu.memory_space<vmem>>, vector<3x128xf32>
    tpu.vector_store %arg4[%c15, %c0_21], %44 {strides = array<i32>} : memref<56x128xf32, #tpu.memory_space<vmem>>, vector<3x128xf32>,
    %c39 = arith.constant 39 : index
    %c0_22 = arith.constant 0 : index
    %49 = vector.load %arg4[%c39, %c0_22] : memref<56x128xf32, #tpu.memory_space<vmem>>, vector<3x128xf32>
    tpu.vector_store %arg4[%c39, %c0_22], %47 {strides = array<i32>} : memref<56x128xf32, #tpu.memory_space<vmem>>, vector<3x128xf32>,
    %cst_23 = arith.constant 2.000000e+00 : f32
    %50 = vector.broadcast %cst_23 : f32 to vector<3x128xf32>
    %51 = arith.mulf %50, %44 : vector<3x128xf32>
    %52 = arith.mulf %51, %47 : vector<3x128xf32>
    %53 = arith.mulf %47, %47 : vector<3x128xf32>
    %54 = arith.mulf %44, %44 : vector<3x128xf32>
    %55 = arith.subf %53, %54 : vector<3x128xf32>
    %c18 = arith.constant 18 : index
    %c0_24 = arith.constant 0 : index
    %56 = vector.load %arg4[%c18, %c0_24] : memref<56x128xf32, #tpu.memory_space<vmem>>, vector<3x128xf32>
    tpu.vector_store %arg4[%c18, %c0_24], %52 {strides = array<i32>} : memref<56x128xf32, #tpu.memory_space<vmem>>, vector<3x128xf32>,
    %c42 = arith.constant 42 : index
    %c0_25 = arith.constant 0 : index
    %57 = vector.load %arg4[%c42, %c0_25] : memref<56x128xf32, #tpu.memory_space<vmem>>, vector<3x128xf32>
    tpu.vector_store %arg4[%c42, %c0_25], %55 {strides = array<i32>} : memref<56x128xf32, #tpu.memory_space<vmem>>, vector<3x128xf32>,
    %cst_26 = arith.constant 2.000000e+00 : f32
    %58 = vector.broadcast %cst_26 : f32 to vector<3x128xf32>
    %59 = arith.mulf %58, %52 : vector<3x128xf32>
    %60 = arith.mulf %59, %55 : vector<3x128xf32>
    %61 = arith.mulf %55, %55 : vector<3x128xf32>
    %62 = arith.mulf %52, %52 : vector<3x128xf32>
    %63 = arith.subf %61, %62 : vector<3x128xf32>
    %c21 = arith.constant 21 : index
    %c0_27 = arith.constant 0 : index
    %64 = vector.load %arg4[%c21, %c0_27] : memref<56x128xf32, #tpu.memory_space<vmem>>, vector<3x128xf32>
    tpu.vector_store %arg4[%c21, %c0_27], %60 {strides = array<i32>} : memref<56x128xf32, #tpu.memory_space<vmem>>, vector<3x128xf32>,
    %c45 = arith.constant 45 : index
    %c0_28 = arith.constant 0 : index
    %65 = vector.load %arg4[%c45, %c0_28] : memref<56x128xf32, #tpu.memory_space<vmem>>, vector<3x128xf32>
    tpu.vector_store %arg4[%c45, %c0_28], %63 {strides = array<i32>} : memref<56x128xf32, #tpu.memory_space<vmem>>, vector<3x128xf32>,
    %c0_29 = arith.constant 0 : index
    %c0_30 = arith.constant 0 : index
    %66 = vector.load %arg4[%c0_29, %c0_30] : memref<56x128xf32, #tpu.memory_space<vmem>>, vector<56x128xf32>
    %c0_31 = arith.constant 0 : index
    %c0_32 = arith.constant 0 : index
    %67 = vector.load %arg2[%c0_31, %c0_32] : memref<56x32xf32, #tpu.memory_space<vmem>>, vector<56x32xf32>
    %cst_33 = arith.constant dense<0.000000e+00> : vector<128x32xf32>
    %68 = tpu.matmul %66, %67, %cst_33 {dimension_numbers = #tpu.dot_dimension_numbers<[0], [0], [1], [1], [0, 1, 1, 1], [], []>} : vector<56x128xf32>, vector<56x32xf32>, vector<128x32xf32> -> vector<128x32xf32>
    %c0_34 = arith.constant 0 : index
    %c0_35 = arith.constant 0 : index
    %69 = vector.load %arg3[%c0_34, %c0_35] : memref<128x32xf32, #tpu.memory_space<vmem>>, vector<128x32xf32>
    tpu.vector_store %arg3[%c0_34, %c0_35], %68 {strides = array<i32>} : memref<128x32xf32, #tpu.memory_space<vmem>>, vector<128x32xf32>,
    return
  }
  func.func @transform_0(%arg0: i32) -> (i32, i32) {
    %c0_i32 = arith.constant 0 : i32
    %c0_i32_0 = arith.constant 0 : i32
    return %c0_i32, %arg0 : i32, i32
  }
  func.func @transform_1(%arg0: i32) -> (i32, i32) {
    %c0_i32 = arith.constant 0 : i32
    %c0_i32_0 = arith.constant 0 : i32
    %c0_i32_1 = arith.constant 0 : i32
    return %c0_i32, %c0_i32_0 : i32, i32
  }
  func.func @transform_2(%arg0: i32) -> (i32, i32) {
    %c0_i32 = arith.constant 0 : i32
    %c0_i32_0 = arith.constant 0 : i32
    return %arg0, %c0_i32 : i32, i32
  }
}

</mosaic_0001>

<llo_original>
// kernel: fourier_point_encoder.1
$region0: #{fourier_point_encoder.1}
  #allocation0 [shape = 'u32[]', space=smem, size = 0x4, offset = 0x4, fixed_abs, tag = 'smem constant byte address 0x4 - core index']
  #allocation1 [shape = 'u32[144,128]{1,0:T(1,128)}', space=vmem, size = 0x12000, scoped, tag = 'internal scratch']
  #allocation2 [shape = 'f32[56,128]{1,0:T(8,128)}', space=vmem, size = 0x7000, scoped, tag = 'scratch operand']
  %s0 = inlined_call_operand.vmem [shape: f32[3,128], index: 0, kind: input, shape index: {}]
  %s1 = inlined_call_operand.vmem [shape: f32[56,32], index: 1, kind: input, shape index: {}]
  %s2 = inlined_call_operand.vmem [shape: f32[128,32], index: 2, kind: output, shape index: {}]
  %s3 = sld [smem:[#allocation0]]
  $region18: #{fourier_point_encoder.1} parent=0
    _
  %s5 = ssub.s32 1, %s3
  %s6 = scalar_select 0, %s5, %s3
  // Predicated region
  $region2: #{fourier_point_encoder.1} parent=0 // pred_check
    _
  $region3: #{fourier_point_encoder.1} parent=0 // pred_check_branch
    %8 = sbr.rel (0) target = $region5
  $region4: #{fourier_point_encoder.1} parent=0 // pred_region
    _
  $region5: #{fourier_point_encoder.1} parent=0 // pred_fallthru
    _
  // Predicated region
  $region6: #{fourier_point_encoder.1} parent=0 // pred_check
    _
  $region7: #{fourier_point_encoder.1} parent=0 // pred_check_branch
    %10 = sbr.rel (0) target = $region9
  $region8: #{fourier_point_encoder.1} parent=0 // pred_region
    _
  $region9: #{fourier_point_encoder.1} parent=0 // pred_fallthru
    _
  %v11 = vld [vmem:[%s0] sm:$0x7]
  %12 = vst [vmem:[#allocation2 + $0x30] sm:$0x7] %v11
  %13 = vst [vmem:[#allocation2 + $0x33] sm:$0x1] 1.0
  %14 = vst [vmem:[#allocation2 + $0x34] sm:$0xf] 0.0
  %v15 = vand.u32 2147483647, %v11
  %vm16 = vcmp.le.f32.partialorder %v15, 0.7853982
  %vm17 = vcmp.lt.s32.totalorder %v11, 0
  %v18 = vand.u32 %v11, 2139095040
  %v19 = vshrl.u32 %v18, 23
  %v20 = vsub.s32 %v19, 127
  %v21 = vand.u32 2147483647, %v11
  %v22 = vand.u32 %v21, 8388607
  %v23 = vor.u32 %v22, 8388608
  %v24 = vsub.s32 0, %v23
  %v25 = vadd.s32 %v20, 1
  %vm26 = vcmp.gt.s32.totalorder %v25, 0
  %v27 = vsel %vm26, %v25, 0
  %v28 = vshrl.u32 %v27, 5
  %v29 = vand.u32 %v27, 31
  %v30 = vsub.s32 32, %v29
  %v31 = vshrl.u32 683565275, %v30
  %v32 = vshll.u32 683565275, %v29
  %v33 = vshrl.u32 2475754826, %v30
  %v34 = vor.u32 %v32, %v33
  %v35 = vshll.u32 2475754826, %v29
  %v36 = vshrl.u32 2131351028, %v30
  %v37 = vor.u32 %v35, %v36
  %v38 = vshll.u32 2131351028, %v29
  %v39 = vshrl.u32 2102212464, %v30
  %v40 = vor.u32 %v38, %v39
  %v41 = vshll.u32 2102212464, %v29
  %v42 = vshrl.u32 920167782, %v30
  %v43 = vor.u32 %v41, %v42
  %v44 = vshll.u32 920167782, %v29
  %v45 = vshrl.u32 1326507024, %v30
  %v46 = vor.u32 %v44, %v45
  %vm47 = vcmp.lt.s32.totalorder %v28, 1
  %vm48 = vcmp.lt.s32.totalorder %v28, 2
  %vm49 = vcmp.lt.s32.totalorder %v28, 3
  %vm50 = vcmp.lt.s32.totalorder %v28, 4
  %v51 = vsel %vm47, %v31, %v34
  %v52 = vsel %vm50, %v40, 2102212464
  %v53 = vsel %vm49, %v37, %v52
  %v54 = vsel %vm48, %v51, %v53
  %v55 = vsel %vm47, %v34, %v37
  %v56 = vsel %vm50, %v43, 920167782
  %v57 = vsel %vm49, %v40, %v56
  %v58 = vsel %vm48, %v55, %v57
  %v59 = vsel %vm47, %v37, %v40
  %v60 = vsel %vm50, %v46, 1326507024
  %v61 = vsel %vm49, %v43, %v60
  %v62 = vsel %vm48, %v59, %v61
  %v63 = vshll.u32 %v23, 8
  %v64 = vmul.u32.u64.compose %v63, %v62
  %v65 = vextract.low.u32 %v64
  %v66 = vextract.high.u32 %v64
  %v67 = vmul.u32.u64.compose %v63, %v58
  %v68 = vextract.low.u32 %v67
  %v69 = vextract.high.u32 %v67
  %v70 = vmul.u32 %v63, %v54
  %v71 = vadd.s32 %v66, %v68
  %vm72 = vc.u32 %v66, %v68
  %v73 = vadd.s32 %v69, 1
  %v74 = vsel %vm72, %v73, %v69
  %v75 = vadd.s32 %v70, %v74
  %v76 = vadd.s32 %v75, 536870912
  %v77 = vshrl.u32 %v76, 30
  %v78 = vshll.u32 %v77, 30
  %v79 = vsub.s32 %v75, %v78
  %vm80 = vcmp.lt.s32.totalorder %v79, 0
  %v81 = vsub.s32 0, %v79
  %v82 = vsel %vm80, %v81, %v79
  %v83 = vclz %v82
  %v84 = vsub.s32 %v83, 2
  %vm85 = vcmp.gt.s32.totalorder 0, %v84
  %v86 = vsel %vm85, 0, %v84
  %v87 = vsub.s32 32, %v86
  %v88 = vshll.u32 %v79, %v86
  %v89 = vshrl.u32 %v71, %v87
  %v90 = vor.u32 %v88, %v89
  %v91 = vsub.s32 4294967266, %v86
  %v92 = vadd.s32 %v91, 127
  %v93 = vshll.u32 %v92, 23
  %v94 = vor.u32 4788187, %v93
  %v95 = vand.u32 2147483647, %v94
  %v97 = vcvt.s32.f32 %v90
  %v98 = vmul.f32 %v97, %v95
  %v99 = vxor.u32 %v98, 2147483648
  %v100 = vsel %vm17, %v99, %v98
  %v101 = vsub.s32 4, %v77
  %v102 = vsel %vm17, %v101, %v77
  %v103 = vsel %vm16, %v11, %v100
  %v104 = vsel %vm16, 0, %v102
  %v105 = vcosq.f32.pop %v103
  %v106 = vsinq.f32.pop %v103
  %vm107 = vweird.f32 %v11
  %v108 = vadd.s32 %v104, 3
  %v109 = vand.u32 %v108, 3
  %vm110 = vcmp.lt.s32.totalorder %v109, 2
  %vm111 = vcmp.eq.s32.totalorder %v109, 0
  %v112 = vxor.u32 %v106, 2147483648
  %v113 = vsel %vm111, %v105, %v112
  %vm114 = vcmp.eq.s32.totalorder %v109, 2
  %v115 = vxor.u32 %v105, 2147483648
  %v116 = vsel %vm114, %v115, %v106
  %v117 = vsel %vm110, %v113, %v116
  %v118 = vsel %vm107, nan, %v117
  %v119 = vand.u32 2147483647, %v11
  %vm120 = vcmp.le.f32.partialorder %v119, 0.7853982
  %vm121 = vcmp.lt.s32.totalorder %v11, 0
  %v122 = vand.u32 %v11, 2139095040
  %v123 = vshrl.u32 %v122, 23
  %v124 = vsub.s32 %v123, 127
  %v125 = vand.u32 2147483647, %v11
  %v126 = vand.u32 %v125, 8388607
  %v127 = vor.u32 %v126, 8388608
  %v128 = vsub.s32 0, %v127
  %v129 = vadd.s32 %v124, 1
  %vm130 = vcmp.gt.s32.totalorder %v129, 0
  %v131 = vsel %vm130, %v129, 0
  %v132 = vshrl.u32 %v131, 5
  %v133 = vand.u32 %v131, 31
  %v134 = vsub.s32 32, %v133
  %v135 = vshrl.u32 683565275, %v134
  %v136 = vshll.u32 683565275, %v133
  %v137 = vshrl.u32 2475754826, %v134
  %v138 = vor.u32 %v136, %v137
  %v139 = vshll.u32 2475754826, %v133
  %v140 = vshrl.u32 2131351028, %v134
  %v141 = vor.u32 %v139, %v140
  %v142 = vshll.u32 2131351028, %v133
  %v143 = vshrl.u32 2102212464, %v134
  %v144 = vor.u32 %v142, %v143
  %v145 = vshll.u32 2102212464, %v133
  %v146 = vshrl.u32 920167782, %v134
  %v147 = vor.u32 %v145, %v146
  %v148 = vshll.u32 920167782, %v133
  %v149 = vshrl.u32 1326507024, %v134
  %v150 = vor.u32 %v148, %v149
  %vm151 = vcmp.lt.s32.totalorder %v132, 1
  %vm152 = vcmp.lt.s32.totalorder %v132, 2
  %vm153 = vcmp.lt.s32.totalorder %v132, 3
  %vm154 = vcmp.lt.s32.totalorder %v132, 4
  %v155 = vsel %vm151, %v135, %v138
  %v156 = vsel %vm154, %v144, 2102212464
  %v157 = vsel %vm153, %v141, %v156
  %v158 = vsel %vm152, %v155, %v157
  %v159 = vsel %vm151, %v138, %v141
  %v160 = vsel %vm154, %v147, 920167782
  %v161 = vsel %vm153, %v144, %v160
  %v162 = vsel %vm152, %v159, %v161
  %v163 = vsel %vm151, %v141, %v144
  %v164 = vsel %vm154, %v150, 1326507024
  %v165 = vsel %vm153, %v147, %v164
  %v166 = vsel %vm152, %v163, %v165
  %v167 = vshll.u32 %v127, 8
  %v168 = vmul.u32.u64.compose %v167, %v166
  %v169 = vextract.low.u32 %v168
  %v170 = vextract.high.u32 %v168
  %v171 = vmul.u32.u64.compose %v167, %v162
  %v172 = vextract.low.u32 %v171
  %v173 = vextract.high.u32 %v171
  %v174 = vmul.u32 %v167, %v158
  %v175 = vadd.s32 %v170, %v172
  %vm176 = vc.u32 %v170, %v172
  %v177 = vadd.s32 %v173, 1
  %v178 = vsel %vm176, %v177, %v173
  %v179 = vadd.s32 %v174, %v178
  %v180 = vadd.s32 %v179, 536870912
  %v181 = vshrl.u32 %v180, 30
  %v182 = vshll.u32 %v181, 30
  %v183 = vsub.s32 %v179, %v182
  %vm184 = vcmp.lt.s32.totalorder %v183, 0
  %v185 = vsub.s32 0, %v183
  %v186 = vsel %vm184, %v185, %v183
  %v187 = vclz %v186
  %v188 = vsub.s32 %v187, 2
  %vm189 = vcmp.gt.s32.totalorder 0, %v188
  %v190 = vsel %vm189, 0, %v188
  %v191 = vsub.s32 32, %v190
  %v192 = vshll.u32 %v183, %v190
  %v193 = vshrl.u32 %v175, %v191
  %v194 = vor.u32 %v192, %v193
  %v195 = vsub.s32 4294967266, %v190
  %v196 = vadd.s32 %v195, 127
  %v197 = vshll.u32 %v196, 23
  %v198 = vor.u32 4788187, %v197
  %v199 = vand.u32 2147483647, %v198
  %v201 = vcvt.s32.f32 %v194
  %v202 = vmul.f32 %v201, %v199
  %v203 = vxor.u32 %v202, 2147483648
  %v204 = vsel %vm121, %v203, %v202
  %v205 = vsub.s32 4, %v181
  %v206 = vsel %vm121, %v205, %v181
  %v207 = vsel %vm120, %v11, %v204
  %v208 = vsel %vm120, 0, %v206
  %v209 = vcosq.f32.pop %v207
  %v210 = vsinq.f32.pop %v207
  %vm211 = vweird.f32 %v11
  %v212 = vand.u32 %v208, 3
  %vm213 = vcmp.lt.s32.totalorder %v212, 2
  %vm214 = vcmp.eq.s32.totalorder %v212, 0
  %v215 = vxor.u32 %v210, 2147483648
  %v216 = vsel %vm214, %v209, %v215
  %vm217 = vcmp.eq.s32.totalorder %v212, 2
  %v218 = vxor.u32 %v209, 2147483648
  %v219 = vsel %vm217, %v218, %v210
  %v220 = vsel %vm213, %v216, %v219
  %v221 = vsel %vm211, nan, %v220
  %222 = vst [vmem:[#allocation2] sm:$0x7] %v118
  %223 = vst [vmem:[#allocation2 + $0x18] sm:$0x7] %v221
  %v224 = vmul.f32 %v118, 2.0
  %v225 = vmul.f32 %v224, %v221
  %v226 = vmul.f32 %v221, %v221
  %v227 = vmul.f32 %v118, %v118
  %v228 = vsub.f32 %v226, %v227
  %229 = vst [vmem:[#allocation2 + $0x3] sm:$0x7] %v225
  %230 = vst [vmem:[#allocation2 + $0x1b] sm:$0x7] %v228
  %v231 = vmul.f32 %v225, 2.0
  %v232 = vmul.f32 %v231, %v228
  %v233 = vmul.f32 %v228, %v228
  %v234 = vmul.f32 %v225, %v225
  %v235 = vsub.f32 %v233, %v234
  %236 = vst [vmem:[#allocation2 + $0x6] sm:$0x7] %v232
  %237 = vst [vmem:[#allocation2 + $0x1e] sm:$0x7] %v235
  %v238 = vmul.f32 %v232, 2.0
  %v239 = vmul.f32 %v238, %v235
  %v240 = vmul.f32 %v235, %v235
  %v241 = vmul.f32 %v232, %v232
  %v242 = vsub.f32 %v240, %v241
  %243 = vst [vmem:[#allocation2 + $0x9] sm:$0x7] %v239
  %244 = vst [vmem:[#allocation2 + $0x21] sm:$0x7] %v242
  %v245 = vmul.f32 %v239, 2.0
  %v246 = vmul.f32 %v245, %v242
  %v247 = vmul.f32 %v242, %v242
  %v248 = vmul.f32 %v239, %v239
  %v249 = vsub.f32 %v247, %v248
  %250 = vst [vmem:[#allocation2 + $0xc] sm:$0x7] %v246
  %251 = vst [vmem:[#allocation2 + $0x24] sm:$0x7] %v249
  %v252 = vmul.f32 %v246, 2.0
  %v253 = vmul.f32 %v252, %v249
  %v254 = vmul.f32 %v249, %v249
  %v255 = vmul.f32 %v246, %v246
  %v256 = vsub.f32 %v254, %v255
  %257 = vst [vmem:[#allocation2 + $0xf] sm:$0x7] %v253
  %258 = vst [vmem:[#allocation2 + $0x27] sm:$0x7] %v256
  %v259 = vmul.f32 %v253, 2.0
  %v260 = vmul.f32 %v259, %v256
  %v261 = vmul.f32 %v256, %v256
  %v262 = vmul.f32 %v253, %v253
  %v263 = vsub.f32 %v261, %v262
  %264 = vst [vmem:[#allocation2 + $0x12] sm:$0x7] %v260
  %265 = vst [vmem:[#allocation2 + $0x2a] sm:$0x7] %v263
  %v266 = vmul.f32 %v260, 2.0
  %v267 = vmul.f32 %v266, %v263
  %v268 = vmul.f32 %v263, %v263
  %v269 = vmul.f32 %v260, %v260
  %v270 = vsub.f32 %v268, %v269
  %271 = vst [vmem:[#allocation2 + $0x15] sm:$0x7] %v267
  %272 = vst [vmem:[#allocation2 + $0x2d] sm:$0x7] %v270
  %v273 = vld [vmem:[#allocation2] sm:$0xff]
  %v274 = vld [vmem:[#allocation2 + $0x8] sm:$0xff]
  %v275 = vld [vmem:[#allocation2 + $0x10] sm:$0xff]
  %v276 = vld [vmem:[#allocation2 + $0x18] sm:$0xff]
  %v277 = vld [vmem:[#allocation2 + $0x20] sm:$0xff]
  %v278 = vld [vmem:[#allocation2 + $0x28] sm:$0xff]
  %v279 = vld [vmem:[#allocation2 + $0x30] sm:$0xff]
  %v280 = vld [vmem:[%s1] sm:$0xff]
  %v281 = vld [vmem:[%s1 + $0x8] sm:$0xff]
  %v282 = vld [vmem:[%s1 + $0x10] sm:$0xff]
  %v283 = vld [vmem:[%s1 + $0x18] sm:$0xff]
  %v284 = vld [vmem:[%s1 + $0x20] sm:$0xff]
  %v285 = vld [vmem:[%s1 + $0x28] sm:$0xff]
  %v286 = vld [vmem:[%s1 + $0x30] sm:$0xff]
  %287 = vxpose.xlu0.b32.start [1/16] %v273, 128
  %288 = vxpose.xlu0.b32.cont [2/16] %v274, 128
  %289 = vxpose.xlu0.b32.cont [3/16] %v275, 128
  %290 = vxpose.xlu0.b32.cont [4/16] %v276, 128
  %291 = vxpose.xlu0.b32.cont [5/16] %v277, 128
  %292 = vxpose.xlu0.b32.cont [6/16] %v278, 128
  %293 = vxpose.xlu0.b32.cont [7/16] %v279, 128
  %294 = vxpose.xlu0.b32.cont [8/16] 0.0, 128
  %295 = vxpose.xlu0.b32.cont [9/16] 0.0, 128
  %296 = vxpose.xlu0.b32.cont [10/16] 0.0, 128
  %297 = vxpose.xlu0.b32.cont [11/16] 0.0, 128
  %298 = vxpose.xlu0.b32.cont [12/16] 0.0, 128
  %299 = vxpose.xlu0.b32.cont [13/16] 0.0, 128
  %300 = vxpose.xlu0.b32.cont [14/16] 0.0, 128
  %301 = vxpose.xlu0.b32.cont [15/16] 0.0, 128
  %302 = vxpose.xlu0.b32.end [16/16] 0.0, 128
  %v303 = vpop.trf.xlu0
  %v304 = vpop.trf.xlu0
  %v305 = vpop.trf.xlu0
  %v306 = vpop.trf.xlu0
  %v307 = vpop.trf.xlu0
  %v308 = vpop.trf.xlu0
  %v309 = vpop.trf.xlu0
  %v310 = vpop.trf.xlu0
  %v311 = vpop.trf.xlu0
  %v312 = vpop.trf.xlu0
  %v313 = vpop.trf.xlu0
  %v314 = vpop.trf.xlu0
  %v315 = vpop.trf.xlu0
  %v316 = vpop.trf.xlu0
  %v317 = vpop.trf.xlu0
  %v318 = vpop.trf.xlu0
  %vm319 = vcmask 457728
  %v321 = vsel %vm319, %v303, 0
  %v324 = vsel %vm319, %v304, 0
  %v327 = vsel %vm319, %v305, 0
  %v330 = vsel %vm319, %v306, 0
  %v333 = vsel %vm319, %v307, 0
  %v336 = vsel %vm319, %v308, 0
  %v339 = vsel %vm319, %v309, 0
  %v342 = vsel %vm319, %v310, 0
  %v345 = vsel %vm319, %v311, 0
  %v348 = vsel %vm319, %v312, 0
  %v351 = vsel %vm319, %v313, 0
  %v354 = vsel %vm319, %v314, 0
  %v357 = vsel %vm319, %v315, 0
  %v360 = vsel %vm319, %v316, 0
  %v363 = vsel %vm319, %v317, 0
  %v366 = vsel %vm319, %v318, 0
  %368 = vmatprep.subr.mxu0 0.0
  %369 = vmatpush1.msra.mxu0 0.0
  %370 = vmatprep.subr.mxu0 0.0
  %371 = vmatpush1.msra.mxu0 0.0
  %372 = vmatprep.subr.mxu0 0.0
  %373 = vmatpush1.msra.mxu0 0.0
  %374 = vmatprep.subr.mxu0 0.0
  %375 = vmatpush1.msra.mxu0 0.0
  %376 = vmatprep.subr.mxu0 0.0
  %377 = vmatpush1.msra.mxu0 0.0
  %378 = vmatprep.subr.mxu0 0.0
  %379 = vmatpush1.msra.mxu0 0.0
  %380 = vmatprep.subr.mxu0 0.0
  %381 = vmatpush1.msra.mxu0 0.0
  %382 = vmatprep.subr.mxu0 0.0
  %383 = vmatpush1.msra.mxu0 0.0
  %384 = vmatprep.subr.mxu0 0.0
  %385 = vmatpush1.msra.mxu0 0.0
  %386 = vmatprep.subr.mxu0 0.0
  %387 = vmatpush1.msra.mxu0 %v286
  %388 = vmatprep.subr.mxu0 0.0
  %389 = vmatpush1.msra.mxu0 %v285
  %390 = vmatprep.subr.mxu0 0.0
  %391 = vmatpush1.msra.mxu0 %v284
  %392 = vmatprep.subr.mxu0 0.0
  %393 = vmatpush1.msra.mxu0 %v283
  %394 = vmatprep.subr.mxu0 0.0
  %395 = vmatpush1.msra.mxu0 %v282
  %396 = vmatprep.subr.mxu0 0.0
  %397 = vmatpush1.msra.mxu0 %v281
  %398 = vmatprep.subr.mxu0 0.0
  %399 = vmatpush1.msra.mxu0 %v280
  %400 = vmatprep.subr.mxu0 0.0
  %401 = vmatpush2.msra.mxu0 0.0
  %402 = vmatprep.subr.mxu0 0.0
  %403 = vmatpush2.msra.mxu0 0.0
  %404 = vmatprep.subr.mxu0 0.0
  %405 = vmatpush2.msra.mxu0 0.0
  %406 = vmatprep.subr.mxu0 0.0
  %407 = vmatpush2.msra.mxu0 0.0
  %408 = vmatprep.subr.mxu0 0.0
  %409 = vmatpush2.msra.mxu0 0.0
  %410 = vmatprep.subr.mxu0 0.0
  %411 = vmatpush2.msra.mxu0 0.0
  %412 = vmatprep.subr.mxu0 0.0
  %413 = vmatpush2.msra.mxu0 0.0
  %414 = vmatprep.subr.mxu0 0.0
  %415 = vmatpush2.msra.mxu0 0.0
  %416 = vmatprep.subr.mxu0 0.0
  %417 = vmatpush2.msra.mxu0 0.0
  %418 = vmatprep.subr.mxu0 0.0
  %419 = vmatpush2.msra.mxu0 0.0
  %420 = vmatprep.subr.mxu0 0.0
  %421 = vmatpush2.msra.mxu0 0.0
  %422 = vmatprep.subr.mxu0 0.0
  %423 = vmatpush2.msra.mxu0 0.0
  %424 = vmatprep.subr.mxu0 0.0
  %425 = vmatpush2.msra.mxu0 0.0
  %426 = vmatprep.subr.mxu0 0.0
  %427 = vmatpush2.msra.mxu0 0.0
  %428 = vmatprep.subr.mxu0 0.0
  %429 = vmatpush2.msra.mxu0 0.0
  %430 = vmatprep.subr.mxu0 0.0
  %431 = vmatpush2.msra.mxu0 0.0
  %432 = vmatprep.mubr.f32.mxu0 0.0
  %433 = vmatmul.mubr.f32.gmra.mxu0 %v321
  %v434 = vpop.f32.mrf.mxu0
  %v435 = vadd.f32 0.0, %v434
  %v436 = vpop.f32.mrf.mxu0
  %437 = vmatprep.mubr.f32.mxu0 0.0
  %438 = vmatmul.mubr.f32.gmra.mxu0 %v324
  %v439 = vpop.f32.mrf.mxu0
  %v440 = vadd.f32 0.0, %v439
  %v441 = vpop.f32.mrf.mxu0
  %442 = vmatprep.mubr.f32.mxu0 0.0
  %443 = vmatmul.mubr.f32.gmra.mxu0 %v327
  %v444 = vpop.f32.mrf.mxu0
  %v445 = vadd.f32 0.0, %v444
  %v446 = vpop.f32.mrf.mxu0
  %447 = vmatprep.mubr.f32.mxu0 0.0
  %448 = vmatmul.mubr.f32.gmra.mxu0 %v330
  %v449 = vpop.f32.mrf.mxu0
  %v450 = vadd.f32 0.0, %v449
  %v451 = vpop.f32.mrf.mxu0
  %452 = vmatprep.mubr.f32.mxu0 0.0
  %453 = vmatmul.mubr.f32.gmra.mxu0 %v333
  %v454 = vpop.f32.mrf.mxu0
  %v455 = vadd.f32 0.0, %v454
  %v456 = vpop.f32.mrf.mxu0
  %457 = vmatprep.mubr.f32.mxu0 0.0
  %458 = vmatmul.mubr.f32.gmra.mxu0 %v336
  %v459 = vpop.f32.mrf.mxu0
  %v460 = vadd.f32 0.0, %v459
  %v461 = vpop.f32.mrf.mxu0
  %462 = vmatprep.mubr.f32.mxu0 0.0
  %463 = vmatmul.mubr.f32.gmra.mxu0 %v339
  %v464 = vpop.f32.mrf.mxu0
  %v465 = vadd.f32 0.0, %v464
  %v466 = vpop.f32.mrf.mxu0
  %467 = vmatprep.mubr.f32.mxu0 0.0
  %468 = vmatmul.mubr.f32.gmra.mxu0 %v342
  %v469 = vpop.f32.mrf.mxu0
  %v470 = vadd.f32 0.0, %v469
  %v471 = vpop.f32.mrf.mxu0
  %472 = vmatprep.mubr.f32.mxu0 0.0
  %473 = vmatmul.mubr.f32.gmra.mxu0 %v345
  %v474 = vpop.f32.mrf.mxu0
  %v475 = vadd.f32 0.0, %v474
  %v476 = vpop.f32.mrf.mxu0
  %477 = vmatprep.mubr.f32.mxu0 0.0
  %478 = vmatmul.mubr.f32.gmra.mxu0 %v348
  %v479 = vpop.f32.mrf.mxu0
  %v480 = vadd.f32 0.0, %v479
  %v481 = vpop.f32.mrf.mxu0
  %482 = vmatprep.mubr.f32.mxu0 0.0
  %483 = vmatmul.mubr.f32.gmra.mxu0 %v351
  %v484 = vpop.f32.mrf.mxu0
  %v485 = vadd.f32 0.0, %v484
  %v486 = vpop.f32.mrf.mxu0
  %487 = vmatprep.mubr.f32.mxu0 0.0
  %488 = vmatmul.mubr.f32.gmra.mxu0 %v354
  %v489 = vpop.f32.mrf.mxu0
  %v490 = vadd.f32 0.0, %v489
  %v491 = vpop.f32.mrf.mxu0
  %492 = vmatprep.mubr.f32.mxu0 0.0
  %493 = vmatmul.mubr.f32.gmra.mxu0 %v357
  %v494 = vpop.f32.mrf.mxu0
  %v495 = vadd.f32 0.0, %v494
  %v496 = vpop.f32.mrf.mxu0
  %497 = vmatprep.mubr.f32.mxu0 0.0
  %498 = vmatmul.mubr.f32.gmra.mxu0 %v360
  %v499 = vpop.f32.mrf.mxu0
  %v500 = vadd.f32 0.0, %v499
  %v501 = vpop.f32.mrf.mxu0
  %502 = vmatprep.mubr.f32.mxu0 0.0
  %503 = vmatmul.mubr.f32.gmra.mxu0 %v363
  %v504 = vpop.f32.mrf.mxu0
  %v505 = vadd.f32 0.0, %v504
  %v506 = vpop.f32.mrf.mxu0
  %507 = vmatprep.mubr.f32.mxu0 0.0
  %508 = vmatmul.mubr.f32.gmra.mxu0 %v366
  %v509 = vpop.f32.mrf.mxu0
  %v510 = vadd.f32 0.0, %v509
  %v511 = vpop.f32.mrf.mxu0
  %512 = vdwg.mxu0
  %vm513 = vcmask 261120
  %514 = vst.msk [vmem:[%s2] sm:$0xff] %vm513, %v435
  %515 = vst.msk [vmem:[%s2 + $0x8] sm:$0xff] %vm513, %v440
  %516 = vst.msk [vmem:[%s2 + $0x10] sm:$0xff] %vm513, %v445
  %517 = vst.msk [vmem:[%s2 + $0x18] sm:$0xff] %vm513, %v450
  %518 = vst.msk [vmem:[%s2 + $0x20] sm:$0xff] %vm513, %v455
  %519 = vst.msk [vmem:[%s2 + $0x28] sm:$0xff] %vm513, %v460
  %520 = vst.msk [vmem:[%s2 + $0x30] sm:$0xff] %vm513, %v465
  %521 = vst.msk [vmem:[%s2 + $0x38] sm:$0xff] %vm513, %v470
  %522 = vst.msk [vmem:[%s2 + $0x40] sm:$0xff] %vm513, %v475
  %523 = vst.msk [vmem:[%s2 + $0x48] sm:$0xff] %vm513, %v480
  %524 = vst.msk [vmem:[%s2 + $0x50] sm:$0xff] %vm513, %v485
  %525 = vst.msk [vmem:[%s2 + $0x58] sm:$0xff] %vm513, %v490
  %526 = vst.msk [vmem:[%s2 + $0x60] sm:$0xff] %vm513, %v495
  %527 = vst.msk [vmem:[%s2 + $0x68] sm:$0xff] %vm513, %v500
  %528 = vst.msk [vmem:[%s2 + $0x70] sm:$0xff] %vm513, %v505
  %529 = vst.msk [vmem:[%s2 + $0x78] sm:$0xff] %vm513, %v510
  // Predicated region
  $region10: #{fourier_point_encoder.1} parent=0 // pred_check
    _
  $region11: #{fourier_point_encoder.1} parent=0 // pred_check_branch
    %531 = sbr.rel (0) target = $region13
  $region12: #{fourier_point_encoder.1} parent=0 // pred_region
    _
  $region13: #{fourier_point_encoder.1} parent=0 // pred_fallthru
    _
  // Predicated region
  $region14: #{fourier_point_encoder.1} parent=0 // pred_check
    _
  $region15: #{fourier_point_encoder.1} parent=0 // pred_check_branch
    %533 = sbr.rel (0) target = $region17
  $region16: #{fourier_point_encoder.1} parent=0 // pred_region
    _
  $region17: #{fourier_point_encoder.1} parent=0 // pred_fallthru
    _

</llo_original>
